<compile_context>
chip_gen: v7x
topology: tpu7x:2x2x1
jax: 0.10.0
libtpu: 0.0.40
codegen_flags: <defaults>
</compile_context>

<pallas_src>
import functools
import math

import jax
import jax.numpy as jnp
from jax.experimental import pallas as pl
from jax.experimental.pallas import tpu as pltpu


def _rmsnorm_kernel(x_ref, w_ref, o_ref, *, eps):
    # x_ref: (ROW_TILE, H), w_ref: (1, H), o_ref: (ROW_TILE, H)
    xf = x_ref[...].astype(jnp.float32)
    wf = w_ref[...].astype(jnp.float32)
    variance = jnp.mean(xf * xf, axis=-1, keepdims=True)   # (ROW_TILE, 1)
    inv = jax.lax.rsqrt(variance + eps)                     # EUP rsqrt
    o_ref[...] = (xf * inv * wf).astype(o_ref.dtype)


def rmsnorm(x, weight, eps=1e-6, row_tile=None):
    """RMSNorm over the last axis of `x`. `weight` has shape (hidden,)."""
    orig_shape = x.shape
    hidden = orig_shape[-1]
    rows = math.prod(orig_shape[:-1]) if len(orig_shape) > 1 else 1

    x2d = x.reshape(rows, hidden)
    w2d = weight.reshape(1, hidden)

    itemsize = jnp.dtype(x.dtype).itemsize
    w_itemsize = jnp.dtype(weight.dtype).itemsize

    if row_tile is None:
        # Working set ~= 2 input bufs + 2 output bufs of (row_tile, hidden).
        # Budget ~40 MiB -> plenty of headroom on v7x (64 MiB VMEM/TC).
        vmem_budget = 40 * 1024 * 1024
        bytes_per_row = 4 * hidden * itemsize
        row_tile = vmem_budget // max(bytes_per_row, 1)
        row_tile = int(max(8, min(1024, row_tile)))
        row_tile = (row_tile // 8) * 8
    # Never tile wider than the (sublane-rounded) row count.
    row_tile = int(max(8, min(row_tile, ((rows + 7) // 8) * 8)))

    grid = (pl.cdiv(rows, row_tile),)

    # Actual scoped-VMEM need: 2x double-buffered in + out tiles, resident
    # weight, small f32 temporaries.  Add 8 MiB margin; cap at 56 MiB (< v7x
    # physical 64 MiB/TC).
    tile_bytes = row_tile * hidden * itemsize
    vmem_need = 4 * tile_bytes + hidden * w_itemsize \
        + 2 * row_tile * hidden * 4 + (8 << 20)
    vmem_limit = int(min(max(vmem_need, 16 << 20), 56 << 20))

    cost = pl.CostEstimate(
        flops=3 * rows * hidden,
        transcendentals=rows,
        bytes_accessed=2 * rows * hidden * itemsize + hidden * w_itemsize,
    )

    out2d = pl.pallas_call(
        functools.partial(_rmsnorm_kernel, eps=eps),
        out_shape=jax.ShapeDtypeStruct((rows, hidden), x.dtype),
        grid_spec=pltpu.PrefetchScalarGridSpec(
            num_scalar_prefetch=0,
            grid=grid,
            in_specs=[
                pl.BlockSpec((row_tile, hidden), lambda i: (i, 0)),
                # Constant block index -> weight stays resident in VMEM.
                pl.BlockSpec((1, hidden), lambda i: (0, 0)),
            ],
            out_specs=pl.BlockSpec((row_tile, hidden), lambda i: (i, 0)),
        ),
        compiler_params=pltpu.CompilerParams(
            dimension_semantics=("parallel",),
            vmem_limit_bytes=vmem_limit,
        ),
        cost_estimate=cost,
    )(x2d, w2d)

    return out2d.reshape(orig_shape)


def rmsnorm_reference(x, weight, eps=1e-6):
    xf = x.astype(jnp.float32)
    variance = jnp.mean(xf * xf, axis=-1, keepdims=True)
    normed = xf * jax.lax.rsqrt(variance + eps)
    return (normed * weight.astype(jnp.float32)).astype(x.dtype)


if __name__ == "__main__":
    key = jax.random.PRNGKey(0)
    hidden = 1024  # matches the module default hidden_size=1024

    # nn.Parameter(torch.ones(hidden_size))
    weight = jnp.ones((hidden,), dtype=jnp.float32)

    # Case 1: rows divide the tile evenly.
    x1 = jax.random.normal(key, (2, 8, hidden), dtype=jnp.float32)
    out1 = jax.block_until_ready(rmsnorm(x1, weight, eps=1e-6))
    ref1 = rmsnorm_reference(x1, weight, eps=1e-6)
    assert out1.shape == x1.shape and out1.dtype == x1.dtype
    assert jnp.allclose(out1, ref1, atol=1e-5, rtol=1e-5), "mismatch (case 1)"

    # Case 2: row count not a multiple of the tile -> exercises the partial
    # last block (no host-side padding copies).
    key2 = jax.random.PRNGKey(0)
    x2 = jax.random.normal(key2, (3, 5, hidden), dtype=jnp.float32)
    out2 = jax.block_until_ready(rmsnorm(x2, weight, eps=1e-6))
    ref2 = rmsnorm_reference(x2, weight, eps=1e-6)
    assert out2.shape == x2.shape and out2.dtype == x2.dtype
    assert jnp.allclose(out2, ref2, atol=1e-5, rtol=1e-5), "mismatch (case 2)"

    # Case 3: bf16 input round-trips through f32 math and casts back once.
    x3 = jax.random.normal(jax.random.PRNGKey(1), (4, 16, hidden),
                           dtype=jnp.bfloat16)
    out3 = jax.block_until_ready(rmsnorm(x3, weight, eps=1e-6))
    ref3 = rmsnorm_reference(x3, weight, eps=1e-6)
    assert out3.shape == x3.shape and out3.dtype == x3.dtype
    assert jnp.allclose(out3.astype(jnp.float32), ref3.astype(jnp.float32),
                        atol=2e-2, rtol=2e-2), "mismatch (case 3)"

    print("KERNEL_OK")
</pallas_src>

<mosaic_0001>
module attributes {stable_mosaic.version = 11 : i64} {
  func.func @_rmsnorm_kernel(%arg0: i32, %arg1: memref<16x1024xf32, #tpu.memory_space<vmem>>, %arg2: memref<1x1024xf32, #tpu.memory_space<vmem>>, %arg3: memref<16x1024xf32, #tpu.memory_space<vmem>>) attributes {dimension_semantics = [#tpu.dimension_semantics<parallel>], iteration_bounds = array<i64: 1>, scalar_prefetch = 0 : i64, scratch_operands = 0 : i64, tpu.core_type = #tpu.core_type<tc>, window_params = [{transform_indices = @transform_0, window_bounds = array<i64: 16, 1024>}, {pipeline_mode = #tpu.pipeline_mode<synchronous>, transform_indices = @transform_1, window_bounds = array<i64: 1, 1024>}, {transform_indices = @transform_2, window_bounds = array<i64: 16, 1024>}]} {
    %c0 = arith.constant 0 : index
    %c0_0 = arith.constant 0 : index
    %0 = vector.load %arg1[%c0, %c0_0] : memref<16x1024xf32, #tpu.memory_space<vmem>>, vector<16x1024xf32>
    %c0_1 = arith.constant 0 : index
    %c0_2 = arith.constant 0 : index
    %1 = vector.load %arg2[%c0_1, %c0_2] : memref<1x1024xf32, #tpu.memory_space<vmem>>, vector<1x1024xf32>
    %2 = arith.mulf %0, %0 : vector<16x1024xf32>
    %cst = arith.constant dense<0.000000e+00> : vector<16xf32>
    %3 = vector.multi_reduction <add>, %2, %cst [1] : vector<16x1024xf32> to vector<16xf32>
    %4 = vector.shape_cast %3 : vector<16xf32> to vector<16x1xf32>
    %cst_3 = arith.constant 1.024000e+03 : f32
    %5 = vector.broadcast %cst_3 : f32 to vector<16x1xf32>
    %6 = arith.divf %4, %5 : vector<16x1xf32>
    %cst_4 = arith.constant 9.99999997E-7 : f32
    %7 = vector.broadcast %cst_4 : f32 to vector<16x1xf32>
    %8 = arith.addf %6, %7 : vector<16x1xf32>
    %9 = math.rsqrt %8 : vector<16x1xf32>
    %10 = vector.broadcast %9 : vector<16x1xf32> to vector<16x1024xf32>
    %11 = arith.mulf %0, %10 : vector<16x1024xf32>
    %12 = vector.broadcast %1 : vector<1x1024xf32> to vector<16x1024xf32>
    %13 = arith.mulf %11, %12 : vector<16x1024xf32>
    %c0_5 = arith.constant 0 : index
    %c0_6 = arith.constant 0 : index
    %14 = vector.load %arg3[%c0_5, %c0_6] : memref<16x1024xf32, #tpu.memory_space<vmem>>, vector<16x1024xf32>
    tpu.vector_store %arg3[%c0_5, %c0_6], %13 {strides = array<i32>} : memref<16x1024xf32, #tpu.memory_space<vmem>>, vector<16x1024xf32>,
    return
  }
  func.func @transform_0(%arg0: i32) -> (i32, i32) {
    %c0_i32 = arith.constant 0 : i32
    %c0_i32_0 = arith.constant 0 : i32
    return %arg0, %c0_i32 : i32, i32
  }
  func.func @transform_1(%arg0: i32) -> (i32, i32) {
    %c0_i32 = arith.constant 0 : i32
    %c0_i32_0 = arith.constant 0 : i32
    %c0_i32_1 = arith.constant 0 : i32
    return %c0_i32, %c0_i32_0 : i32, i32
  }
  func.func @transform_2(%arg0: i32) -> (i32, i32) {
    %c0_i32 = arith.constant 0 : i32
    %c0_i32_0 = arith.constant 0 : i32
    return %arg0, %c0_i32 : i32, i32
  }
}

</mosaic_0001>

<llo_original>
// kernel: tpu_custom_call.1
$region0: #{tpu_custom_call.1}
  #allocation0 [shape = 'u32[]', space=smem, size = 0x4, offset = 0x4, fixed_abs, tag = 'smem constant byte address 0x4 - core index']
  #allocation1 [shape = 'u32[144,128]{1,0:T(1,128)}', space=vmem, size = 0x12000, scoped, tag = 'internal scratch']
  %s0 = inlined_call_operand.hbm [shape: f32[16,1024], index: 0, kind: input, shape index: {}]
  %s1 = inlined_call_operand.hbm [shape: f32[1,1024], index: 1, kind: input, shape index: {}]
  %s2 = inlined_call_operand.hbm [shape: f32[16,1024], index: 2, kind: output, shape index: {}]
  %s3 = sld [smem:[#allocation0]]
  $region26: #{tpu_custom_call.1} parent=0
    _
  %s5 = ssub.s32 1, %s3
  %s6 = scalar_select 0, %s5, %s3
  $region1: #{tpu_custom_call.1} parent=0
    #allocation2 [shape = 'u8[65536]{0}', space=vmem, size = 0x10000, scoped, tag = 'input window, operand 0, single buffered']
    #allocation3 [shape = 's32[1]{0}', space=sflag, size = 0x4, scoped, tag = 'scoped memory for tpu_custom_call.1']
    #allocation4 [shape = 's32[1]{0}', space=sflag, size = 0x4, scoped, tag = 'scoped memory for tpu_custom_call.1']
    #allocation5 [shape = 'u8[4096]{0}', space=vmem, size = 0x1000, scoped, tag = 'input window, operand 1, single buffered']
    #allocation6 [shape = 's32[1]{0}', space=sflag, size = 0x4, scoped, tag = 'scoped memory for tpu_custom_call.1']
    #allocation7 [shape = 'u8[65536]{0}', space=vmem, size = 0x10000, scoped, tag = 'output window, operand 0, single buffered']
    %7 = vsyncpa [#allocation3], 0
    %8 = vsyncpa [#allocation6], 0
    %9 = vsyncpa [#allocation4], 0
    // Predicated region
    $region2: #{tpu_custom_call.1} parent=1 // pred_check
      _
    $region3: #{tpu_custom_call.1} parent=1 // pred_check_branch
      %11 = sbr.rel (0) target = $region5
    $region4: #{tpu_custom_call.1} parent=1 // pred_region
      %s13 = ssub.s32 2048, 2048
      %14 = vsyncadd [#allocation3], %s13
      %s15 = sshll.u32 [#allocation2], 4
      %s16 = int_to_ptr.vmem [resolvable:$true] %s15
      %21 = dma.hbm_to_vmem [thread:$0]  %s0, 2048, %s16, [#allocation3], 1024, 1024, 64
    $region5: #{tpu_custom_call.1} parent=1 // pred_fallthru
      _
    // Predicated region
    $region6: #{tpu_custom_call.1} parent=1 // pred_check
      _
    $region7: #{tpu_custom_call.1} parent=1 // pred_check_branch
      %23 = sbr.rel (0) target = $region9
    $region8: #{tpu_custom_call.1} parent=1 // pred_region
      %s25 = ssub.s32 128, 128
      %26 = vsyncadd [#allocation6], %s25
      %s28 = sshll.u32 [#allocation5], 4
      %s29 = int_to_ptr.vmem [resolvable:$true] %s28
      %31 = dma.hbm_to_vmem [thread:$0]  %s1, 128, %s29, [#allocation6]
    $region9: #{tpu_custom_call.1} parent=1 // pred_fallthru
      _
    // Predicated region
    $region10: #{tpu_custom_call.1} parent=1 // pred_check
      _
    $region11: #{tpu_custom_call.1} parent=1 // pred_check_branch
      %33 = sbr.rel (0) target = $region13
    $region12: #{tpu_custom_call.1} parent=1 // pred_region
      %34 = dma.done [#allocation3], 2048
    $region13: #{tpu_custom_call.1} parent=1 // pred_fallthru
      _
    // Predicated region
    $region14: #{tpu_custom_call.1} parent=1 // pred_check
      _
    $region15: #{tpu_custom_call.1} parent=1 // pred_check_branch
      %36 = sbr.rel (0) target = $region17
    $region16: #{tpu_custom_call.1} parent=1 // pred_region
      %37 = dma.done [#allocation6], 128
    $region17: #{tpu_custom_call.1} parent=1 // pred_fallthru
      _
    %v38 = vld [vmem:[#allocation2] sm:$0xff]
    %v39 = vld [vmem:[#allocation2 + $0x8] sm:$0xff]
    %v40 = vld [vmem:[#allocation2 + $0x10] sm:$0xff]
    %v41 = vld [vmem:[#allocation2 + $0x18] sm:$0xff]
    %v42 = vld [vmem:[#allocation2 + $0x20] sm:$0xff]
    %v43 = vld [vmem:[#allocation2 + $0x28] sm:$0xff]
    %v44 = vld [vmem:[#allocation2 + $0x30] sm:$0xff]
    %v45 = vld [vmem:[#allocation2 + $0x38] sm:$0xff]
    %v46 = vld [vmem:[#allocation2 + $0x40] sm:$0xff]
    %v47 = vld [vmem:[#allocation2 + $0x48] sm:$0xff]
    %v48 = vld [vmem:[#allocation2 + $0x50] sm:$0xff]
    %v49 = vld [vmem:[#allocation2 + $0x58] sm:$0xff]
    %v50 = vld [vmem:[#allocation2 + $0x60] sm:$0xff]
    %v51 = vld [vmem:[#allocation2 + $0x68] sm:$0xff]
    %v52 = vld [vmem:[#allocation2 + $0x70] sm:$0xff]
    %v53 = vld [vmem:[#allocation2 + $0x78] sm:$0xff]
    %v54 = vld [vmem:[#allocation5] sm:$0xff]
    %v55 = vmul.f32 %v38, %v38
    %v56 = vmul.f32 %v39, %v39
    %v57 = vmul.f32 %v40, %v40
    %v58 = vmul.f32 %v41, %v41
    %v59 = vmul.f32 %v42, %v42
    %v60 = vmul.f32 %v43, %v43
    %v61 = vmul.f32 %v44, %v44
    %v62 = vmul.f32 %v45, %v45
    %v63 = vmul.f32 %v46, %v46
    %v64 = vmul.f32 %v47, %v47
    %v65 = vmul.f32 %v48, %v48
    %v66 = vmul.f32 %v49, %v49
    %v67 = vmul.f32 %v50, %v50
    %v68 = vmul.f32 %v51, %v51
    %v69 = vmul.f32 %v52, %v52
    %v70 = vmul.f32 %v53, %v53
    %v71 = vadd.f32 %v55, %v56
    %v72 = vadd.f32 %v71, %v57
    %v73 = vadd.f32 %v72, %v58
    %v74 = vadd.f32 %v73, %v59
    %v75 = vadd.f32 %v74, %v60
    %v76 = vadd.f32 %v75, %v61
    %v77 = vadd.f32 %v76, %v62
    %78 = vadd.xlane.f32.xlu0 %v77
    %v79 = vpop.xlane.xlu0 %78
    %v80 = vadd.f32 %v63, %v64
    %v81 = vadd.f32 %v80, %v65
    %v82 = vadd.f32 %v81, %v66
    %v83 = vadd.f32 %v82, %v67
    %v84 = vadd.f32 %v83, %v68
    %v85 = vadd.f32 %v84, %v69
    %v86 = vadd.f32 %v85, %v70
    %87 = vadd.xlane.f32.xlu0 %v86
    %v88 = vpop.xlane.xlu0 %87
    %v89 = vrcp.pop 1024.0
    %v90 = vmul.f32 %v79, %v89
    %v91 = vmul.f32 %v88, %v89
    %v92 = vadd.f32 %v90, 1e-06
    %v93 = vadd.f32 %v91, 1e-06
    %v94 = vrsqrt.pop %v92
    %v95 = vrsqrt.pop %v93
    %v96 = vmul.f32 %v38, %v94
    %v97 = vmul.f32 %v39, %v94
    %v98 = vmul.f32 %v40, %v94
    %v99 = vmul.f32 %v41, %v94
    %v100 = vmul.f32 %v42, %v94
    %v101 = vmul.f32 %v43, %v94
    %v102 = vmul.f32 %v44, %v94
    %v103 = vmul.f32 %v45, %v94
    %v104 = vmul.f32 %v46, %v95
    %v105 = vmul.f32 %v47, %v95
    %v106 = vmul.f32 %v48, %v95
    %v107 = vmul.f32 %v49, %v95
    %v108 = vmul.f32 %v50, %v95
    %v109 = vmul.f32 %v51, %v95
    %v110 = vmul.f32 %v52, %v95
    %v111 = vmul.f32 %v53, %v95
    %v113 = vlaneseq
    %v114 = vshrl.u32 %v113, 7
    %v115 = vsub.s32 0, %v114
    %v116 = vrot.slane %v54, %v115
    %v117 = vlaneseq
    %v118 = vshrl.u32 %v117, 7
    %v119 = vsub.s32 1, %v118
    %v120 = vrot.slane %v54, %v119
    %v121 = vlaneseq
    %v122 = vshrl.u32 %v121, 7
    %v123 = vsub.s32 2, %v122
    %v124 = vrot.slane %v54, %v123
    %v125 = vlaneseq
    %v126 = vshrl.u32 %v125, 7
    %v127 = vsub.s32 3, %v126
    %v128 = vrot.slane %v54, %v127
    %v129 = vlaneseq
    %v130 = vshrl.u32 %v129, 7
    %v131 = vsub.s32 4, %v130
    %v132 = vrot.slane %v54, %v131
    %v133 = vlaneseq
    %v134 = vshrl.u32 %v133, 7
    %v135 = vsub.s32 5, %v134
    %v136 = vrot.slane %v54, %v135
    %v137 = vlaneseq
    %v138 = vshrl.u32 %v137, 7
    %v139 = vsub.s32 6, %v138
    %v140 = vrot.slane %v54, %v139
    %v141 = vlaneseq
    %v142 = vshrl.u32 %v141, 7
    %v143 = vsub.s32 7, %v142
    %v144 = vrot.slane %v54, %v143
    %v153 = vmul.f32 %v96, %v116
    %v154 = vmul.f32 %v97, %v120
    %v155 = vmul.f32 %v98, %v124
    %v156 = vmul.f32 %v99, %v128
    %v157 = vmul.f32 %v100, %v132
    %v158 = vmul.f32 %v101, %v136
    %v159 = vmul.f32 %v102, %v140
    %v160 = vmul.f32 %v103, %v144
    %v161 = vmul.f32 %v104, %v116
    %v162 = vmul.f32 %v105, %v120
    %v163 = vmul.f32 %v106, %v124
    %v164 = vmul.f32 %v107, %v128
    %v165 = vmul.f32 %v108, %v132
    %v166 = vmul.f32 %v109, %v136
    %v167 = vmul.f32 %v110, %v140
    %v168 = vmul.f32 %v111, %v144
    %169 = vst [vmem:[#allocation7] sm:$0xff] %v153
    %170 = vst [vmem:[#allocation7 + $0x8] sm:$0xff] %v154
    %171 = vst [vmem:[#allocation7 + $0x10] sm:$0xff] %v155
    %172 = vst [vmem:[#allocation7 + $0x18] sm:$0xff] %v156
    %173 = vst [vmem:[#allocation7 + $0x20] sm:$0xff] %v157
    %174 = vst [vmem:[#allocation7 + $0x28] sm:$0xff] %v158
    %175 = vst [vmem:[#allocation7 + $0x30] sm:$0xff] %v159
    %176 = vst [vmem:[#allocation7 + $0x38] sm:$0xff] %v160
    %177 = vst [vmem:[#allocation7 + $0x40] sm:$0xff] %v161
    %178 = vst [vmem:[#allocation7 + $0x48] sm:$0xff] %v162
    %179 = vst [vmem:[#allocation7 + $0x50] sm:$0xff] %v163
    %180 = vst [vmem:[#allocation7 + $0x58] sm:$0xff] %v164
    %181 = vst [vmem:[#allocation7 + $0x60] sm:$0xff] %v165
    %182 = vst [vmem:[#allocation7 + $0x68] sm:$0xff] %v166
    %183 = vst [vmem:[#allocation7 + $0x70] sm:$0xff] %v167
    %184 = vst [vmem:[#allocation7 + $0x78] sm:$0xff] %v168
    // Predicated region
    $region18: #{tpu_custom_call.1} parent=1 // pred_check
      _
    $region19: #{tpu_custom_call.1} parent=1 // pred_check_branch
      %186 = sbr.rel (0) target = $region21
    $region20: #{tpu_custom_call.1} parent=1 // pred_region
      %s188 = ssub.s32 2048, 2048
      %189 = vsyncadd [#allocation4], %s188
      %s190 = sshll.u32 [#allocation7], 4
      %s191 = int_to_ptr.vmem [resolvable:$true] %s190
      %196 = dma.vmem_to_hbm [thread:$0]  %s191, 2048, %s2, [#allocation4], 1024, 1024, 64
    $region21: #{tpu_custom_call.1} parent=1 // pred_fallthru
      _
    // Predicated region
    $region22: #{tpu_custom_call.1} parent=1 // pred_check
      _
    $region23: #{tpu_custom_call.1} parent=1 // pred_check_branch
      %198 = sbr.rel (0) target = $region25
    $region24: #{tpu_custom_call.1} parent=1 // pred_region
      %199 = dma.done [#allocation4], 2048
    $region25: #{tpu_custom_call.1} parent=1 // pred_fallthru
      _
    %200 = vsyncpa [#allocation3], 1
    %201 = vsyncpa [#allocation6], 1
    %202 = vsyncpa [#allocation4], 1

</llo_original>
